<compile_context>
chip_gen: v5e
topology: v5e:2x2
jax: 0.10.0
libtpu: 0.0.40
codegen_flags: <defaults>
</compile_context>

<pallas_src>
import functools

import jax
import jax.numpy as jnp
from jax.experimental import pallas as pl
from jax.experimental.pallas import tpu as pltpu


def _round_up(x, m):
    return ((x + m - 1) // m) * m


def _api_kernel(x1_ref, x2_ref, w1a_ref, w1b_ref, b1_ref, w2_ref, b2_ref,
                out_ref, *, F, out_w):
    cdt = w1a_ref.dtype                       # MXU compute dtype (bf16 or f32)
    x1_in = x1_ref[...]                       # (tb, F), caller dtype
    x2_in = x2_ref[...]

    # Layer 1: Linear(2F -> F): concat(x1,x2) @ W1^T == x1 @ W1a^T + x2 @ W1b^T
    h = (jnp.dot(x1_in.astype(cdt), w1a_ref[...],
                 preferred_element_type=jnp.float32)
         + jnp.dot(x2_in.astype(cdt), w1b_ref[...],
                   preferred_element_type=jnp.float32)
         + b1_ref[...])
    h = jnp.maximum(h, 0.0)                   # ReLU; Dropout(0.5) == identity (eval)

    # Layer 2: Linear(F -> F)
    xm = (jnp.dot(h.astype(cdt), w2_ref[...],
                  preferred_element_type=jnp.float32)
          + b2_ref[...])

    # Gating: f32 VPU math; the sigmoids land on the (separate) EUP slot.
    x1f = x1_in.astype(jnp.float32)
    x2f = x2_in.astype(jnp.float32)
    g1 = jax.nn.sigmoid(xm * x1f)
    g2 = jax.nn.sigmoid(xm * x2f)

    # In-register lane concat (XLU slot) -> one lane-dense full-width store:
    # [x1_self | x1_other | x2_self | x2_other] (+ zero pad to out_w lanes).
    pieces = [x1f * (1.0 + g1),               # x1_self  = x1 + x1*g1
              x1f * (1.0 + g2),               # x1_other = x1 + x1*g2
              x2f * (1.0 + g2),               # x2_self  = x2 + x2*g2
              x2f * (1.0 + g1)]               # x2_other = x2 + x2*g1
    if out_w > 4 * F:
        pieces.append(jnp.zeros((x1f.shape[0], out_w - 4 * F), jnp.float32))
    out_ref[...] = jnp.concatenate(pieces, axis=-1).astype(out_ref.dtype)


def prepare_api_params(params, *, weight_dtype=jnp.bfloat16):
    """One-time parameter prep (hoisted out of the forward path).

    params: dict with w1 (F, 2F), b1 (F,), w2 (F, F), b2 (F,) in PyTorch
    nn.Linear convention (weight is (out_features, in_features)).
    bf16 weights (default) are MXU-native; dots still accumulate in f32.
    """
    w1 = jnp.asarray(params["w1"], jnp.float32)     # (F, 2F)
    w2 = jnp.asarray(params["w2"], jnp.float32)     # (F, F)
    b1 = jnp.asarray(params["b1"], jnp.float32)     # (F,)
    b2 = jnp.asarray(params["b2"], jnp.float32)     # (F,)
    F = w2.shape[0]
    return {
        "F": F,
        "w1a_t": w1[:, :F].T.astype(weight_dtype),  # (F, F): multiplies x1
        "w1b_t": w1[:, F:].T.astype(weight_dtype),  # (F, F): multiplies x2
        "w2_t": w2.T.astype(weight_dtype),          # (F, F)
        "b1": b1.reshape(1, F),                     # (1, F) f32
        "b2": b2.reshape(1, F),                     # (1, F) f32
    }


def _pick_batch_tile(B):
    # Big tiles amortize the ~0.35us/step overhead and fill the 256-wide MXU
    # on v6e/v7x; keep >= 2 grid steps for B >= 16 so the "parallel" axis can
    # be split across cores (v7x megacore).
    if B >= 2048:
        return 512
    if B >= 512:
        return 256
    if B >= 16:
        return _round_up((B + 1) // 2, 8)   # exactly 2 grid steps
    return _round_up(max(B, 1), 8)


def api_component_forward(x1, x2, prepped, *, tb=None, activation_dtype=None,
                          out_dtype=None):
    """APIComponent.forward -> (x1_self, x1_other, x2_self, x2_other)."""
    B, F = x1.shape
    assert x2.shape == (B, F)
    assert F == prepped["F"], "params were prepared for a different feature_dim"

    w_dtype = prepped["w1a_t"].dtype
    if activation_dtype is None:
        # Pass through the caller's dtype: no extra wrapper HBM pass; bf16
        # callers automatically get half the input DMA bytes.
        activation_dtype = x1.dtype
    if out_dtype is None:
        out_dtype = x1.dtype

    if tb is None:
        tb = _pick_batch_tile(B)
    tb = max(8, _round_up(tb, 8))
    Bp = _round_up(B, tb)              # pad the batch: never drop trailing rows
    n_steps = Bp // tb                 # NOTE(v7x): an even step count is best

    x1c = x1.astype(activation_dtype)
    x2c = x2.astype(activation_dtype)
    if Bp != B:
        x1c = jnp.pad(x1c, ((0, Bp - B), (0, 0)))
        x2c = jnp.pad(x2c, ((0, Bp - B), (0, 0)))

    out_w = _round_up(4 * F, 128)      # lane-dense packed output slab width

    # Resident-weight VMEM handling: single-buffer the grid-invariant weights
    # (constant index_map -> never re-fetched) once they are big enough to
    # matter, and raise the scoped VMEM limit only when the estimate exceeds
    # the 16/32 MiB default.
    w_bytes = 3 * F * F * jnp.dtype(w_dtype).itemsize + 2 * 4 * F
    single_buf = w_bytes > (4 << 20)
    act_bytes = tb * (2 * F * jnp.dtype(activation_dtype).itemsize
                      + out_w * jnp.dtype(out_dtype).itemsize)
    est_vmem = (1 if single_buf else 2) * w_bytes + 2 * act_bytes + (2 << 20)
    cp_kwargs = {}
    if est_vmem > (30 << 20):
        # v5e/v6e have 128 MiB physical VMEM; stay well below that.
        # TODO(synk): on v7x (64 MiB) use the K-tiled streaming variant instead.
        cp_kwargs["vmem_limit_bytes"] = int(min(est_vmem * 5 // 4, 100 << 20))

    def _const2d(shape):
        if single_buf:
            return pl.BlockSpec(shape, lambda i: (0, 0),
                                pipeline_mode=pl.Buffered(1))
        return pl.BlockSpec(shape, lambda i: (0, 0))

    out = pl.pallas_call(
        functools.partial(_api_kernel, F=F, out_w=out_w),
        out_shape=jax.ShapeDtypeStruct((Bp, out_w), out_dtype),
        grid_spec=pltpu.PrefetchScalarGridSpec(
            num_scalar_prefetch=0,
            grid=(n_steps,),
            in_specs=[
                pl.BlockSpec((tb, F), lambda i: (i, 0)),   # x1 tile
                pl.BlockSpec((tb, F), lambda i: (i, 0)),   # x2 tile
                _const2d((F, F)),                          # W1a^T (resident)
                _const2d((F, F)),                          # W1b^T (resident)
                _const2d((1, F)),                          # b1
                _const2d((F, F)),                          # W2^T  (resident)
                _const2d((1, F)),                          # b2
            ],
            out_specs=pl.BlockSpec((tb, out_w), lambda i: (i, 0)),
        ),
        compiler_params=pltpu.CompilerParams(
            dimension_semantics=("parallel",), **cp_kwargs),
    )(x1c, x2c, prepped["w1a_t"], prepped["w1b_t"], prepped["b1"],
      prepped["w2_t"], prepped["b2"])

    x1_self = out[:B, 0 * F:1 * F]
    x1_other = out[:B, 1 * F:2 * F]
    x2_self = out[:B, 2 * F:3 * F]
    x2_other = out[:B, 3 * F:4 * F]
    return x1_self, x1_other, x2_self, x2_other


def _reference(x1, x2, params):
    """Plain-JAX f32 reference mirroring the PyTorch module (eval mode)."""
    xm = jnp.concatenate([x1, x2], axis=1)
    xm = jnp.maximum(xm @ params["w1"].T + params["b1"], 0.0)
    xm = xm @ params["w2"].T + params["b2"]
    g1 = jax.nn.sigmoid(xm * x1)
    g2 = jax.nn.sigmoid(xm * x2)
    return (x1 + x1 * g1, x1 + x1 * g2, x2 + x2 * g2, x2 + x2 * g1)


def _check(outs, refs, atol, rtol, tag):
    for o, r in zip(outs, refs):
        assert o.shape == r.shape, f"{tag}: shape {o.shape} vs {r.shape}"
        assert jnp.allclose(o.astype(jnp.float32), r, atol=atol, rtol=rtol), \
            f"{tag}: value mismatch vs reference"


if __name__ == "__main__":
    F = 32  # feature_dim

    key = jax.random.PRNGKey(0)
    kx1, kx2, kw1, kb1, kw2, kb2, kx3, kx4 = jax.random.split(key, 8)

    # Deterministic parameter init (uniform, roughly matching nn.Linear scale).
    lim1 = 1.0 / jnp.sqrt(2.0 * F)
    lim2 = 1.0 / jnp.sqrt(1.0 * F)
    params = {
        "w1": jax.random.uniform(kw1, (F, 2 * F), jnp.float32, -lim1, lim1),
        "b1": jax.random.uniform(kb1, (F,), jnp.float32, -lim1, lim1),
        "w2": jax.random.uniform(kw2, (F, F), jnp.float32, -lim2, lim2),
        "b2": jax.random.uniform(kb2, (F,), jnp.float32, -lim2, lim2),
    }
    prepped_f32 = prepare_api_params(params, weight_dtype=jnp.float32)
    prepped_bf16 = prepare_api_params(params)          # bf16 (MXU-native) default

    # 1) small batch, f32 weights + f32 activations: tight semantics check.
    B = 8
    x1 = jax.random.normal(kx1, (B, F), dtype=jnp.float32)
    x2 = jax.random.normal(kx2, (B, F), dtype=jnp.float32)
    refs = _reference(x1, x2, params)
    outs = jax.block_until_ready(api_component_forward(x1, x2, prepped_f32))
    _check(outs, refs, 1e-5, 1e-5, "f32")

    # 2) bf16 weights + bf16 activation DMA (half the HBM bytes): looser tol.
    outs = jax.block_until_ready(
        api_component_forward(x1, x2, prepped_bf16,
                              activation_dtype=jnp.bfloat16))
    _check(outs, refs, 5e-2, 5e-2, "bf16")

    # 3) multi-step grid + padded batch (tile does not divide B), f32 tight.
    B2 = 200
    x1b = jax.random.normal(kx3, (B2, F), dtype=jnp.float32)
    x2b = jax.random.normal(kx4, (B2, F), dtype=jnp.float32)
    refs_b = _reference(x1b, x2b, params)
    outs_b = jax.block_until_ready(api_component_forward(x1b, x2b, prepped_f32))
    _check(outs_b, refs_b, 1e-5, 1e-5, "f32 multi-step")

    print("KERNEL_OK")
</pallas_src>

<mosaic_0001>
module attributes {stable_mosaic.version = 11 : i64} {
  func.func @_api_kernel(%arg0: i32, %arg1: memref<8x32xf32, #tpu.memory_space<vmem>>, %arg2: memref<8x32xf32, #tpu.memory_space<vmem>>, %arg3: memref<32x32xf32, #tpu.memory_space<vmem>>, %arg4: memref<32x32xf32, #tpu.memory_space<vmem>>, %arg5: memref<1x32xf32, #tpu.memory_space<vmem>>, %arg6: memref<32x32xf32, #tpu.memory_space<vmem>>, %arg7: memref<1x32xf32, #tpu.memory_space<vmem>>, %arg8: memref<8x128xf32, #tpu.memory_space<vmem>>) attributes {dimension_semantics = [#tpu.dimension_semantics<parallel>], iteration_bounds = array<i64: 1>, scalar_prefetch = 0 : i64, scratch_operands = 0 : i64, tpu.core_type = #tpu.core_type<tc>, window_params = [{transform_indices = @transform_0, window_bounds = array<i64: 8, 32>}, {transform_indices = @transform_1, window_bounds = array<i64: 8, 32>}, {pipeline_mode = #tpu.pipeline_mode<synchronous>, transform_indices = @transform_2, window_bounds = array<i64: 32, 32>}, {pipeline_mode = #tpu.pipeline_mode<synchronous>, transform_indices = @transform_3, window_bounds = array<i64: 32, 32>}, {pipeline_mode = #tpu.pipeline_mode<synchronous>, transform_indices = @transform_4, window_bounds = array<i64: 1, 32>}, {pipeline_mode = #tpu.pipeline_mode<synchronous>, transform_indices = @transform_5, window_bounds = array<i64: 32, 32>}, {pipeline_mode = #tpu.pipeline_mode<synchronous>, transform_indices = @transform_6, window_bounds = array<i64: 1, 32>}, {transform_indices = @transform_7, window_bounds = array<i64: 8, 128>}]} {
    %c0 = arith.constant 0 : index
    %c0_0 = arith.constant 0 : index
    %0 = vector.load %arg1[%c0, %c0_0] : memref<8x32xf32, #tpu.memory_space<vmem>>, vector<8x32xf32>
    %c0_1 = arith.constant 0 : index
    %c0_2 = arith.constant 0 : index
    %1 = vector.load %arg2[%c0_1, %c0_2] : memref<8x32xf32, #tpu.memory_space<vmem>>, vector<8x32xf32>
    %c0_3 = arith.constant 0 : index
    %c0_4 = arith.constant 0 : index
    %2 = vector.load %arg3[%c0_3, %c0_4] : memref<32x32xf32, #tpu.memory_space<vmem>>, vector<32x32xf32>
    %cst = arith.constant dense<0.000000e+00> : vector<8x32xf32>
    %3 = tpu.matmul %0, %2, %cst {dimension_numbers = #tpu.dot_dimension_numbers<[1], [0], [0], [1], [0, 0, 1, 1], [], []>} : vector<8x32xf32>, vector<32x32xf32>, vector<8x32xf32> -> vector<8x32xf32>
    %c0_5 = arith.constant 0 : index
    %c0_6 = arith.constant 0 : index
    %4 = vector.load %arg4[%c0_5, %c0_6] : memref<32x32xf32, #tpu.memory_space<vmem>>, vector<32x32xf32>
    %cst_7 = arith.constant dense<0.000000e+00> : vector<8x32xf32>
    %5 = tpu.matmul %1, %4, %cst_7 {dimension_numbers = #tpu.dot_dimension_numbers<[1], [0], [0], [1], [0, 0, 1, 1], [], []>} : vector<8x32xf32>, vector<32x32xf32>, vector<8x32xf32> -> vector<8x32xf32>
    %6 = arith.addf %3, %5 : vector<8x32xf32>
    %c0_8 = arith.constant 0 : index
    %c0_9 = arith.constant 0 : index
    %7 = vector.load %arg5[%c0_8, %c0_9] : memref<1x32xf32, #tpu.memory_space<vmem>>, vector<1x32xf32>
    %8 = vector.broadcast %7 : vector<1x32xf32> to vector<8x32xf32>
    %9 = arith.addf %6, %8 : vector<8x32xf32>
    %cst_10 = arith.constant 0.000000e+00 : f32
    %10 = vector.broadcast %cst_10 : f32 to vector<8x32xf32>
    %11 = arith.maximumf %9, %10 : vector<8x32xf32>
    %c0_11 = arith.constant 0 : index
    %c0_12 = arith.constant 0 : index
    %12 = vector.load %arg6[%c0_11, %c0_12] : memref<32x32xf32, #tpu.memory_space<vmem>>, vector<32x32xf32>
    %cst_13 = arith.constant dense<0.000000e+00> : vector<8x32xf32>
    %13 = tpu.matmul %11, %12, %cst_13 {dimension_numbers = #tpu.dot_dimension_numbers<[1], [0], [0], [1], [0, 0, 1, 1], [], []>} : vector<8x32xf32>, vector<32x32xf32>, vector<8x32xf32> -> vector<8x32xf32>
    %c0_14 = arith.constant 0 : index
    %c0_15 = arith.constant 0 : index
    %14 = vector.load %arg7[%c0_14, %c0_15] : memref<1x32xf32, #tpu.memory_space<vmem>>, vector<1x32xf32>
    %15 = vector.broadcast %14 : vector<1x32xf32> to vector<8x32xf32>
    %16 = arith.addf %13, %15 : vector<8x32xf32>
    %17 = arith.mulf %16, %0 : vector<8x32xf32>
    %18 = arith.negf %17 : vector<8x32xf32>
    %19 = math.exp %18 : vector<8x32xf32>
    %cst_16 = arith.constant 1.000000e+00 : f32
    %20 = vector.broadcast %cst_16 : f32 to vector<8x32xf32>
    %21 = arith.addf %20, %19 : vector<8x32xf32>
    %22 = arith.divf %20, %21 : vector<8x32xf32>
    %23 = arith.mulf %16, %1 : vector<8x32xf32>
    %24 = arith.negf %23 : vector<8x32xf32>
    %25 = math.exp %24 : vector<8x32xf32>
    %cst_17 = arith.constant 1.000000e+00 : f32
    %26 = vector.broadcast %cst_17 : f32 to vector<8x32xf32>
    %27 = arith.addf %26, %25 : vector<8x32xf32>
    %28 = arith.divf %26, %27 : vector<8x32xf32>
    %cst_18 = arith.constant 1.000000e+00 : f32
    %29 = vector.broadcast %cst_18 : f32 to vector<8x32xf32>
    %30 = arith.addf %29, %22 : vector<8x32xf32>
    %31 = arith.mulf %0, %30 : vector<8x32xf32>
    %cst_19 = arith.constant 1.000000e+00 : f32
    %32 = vector.broadcast %cst_19 : f32 to vector<8x32xf32>
    %33 = arith.addf %32, %28 : vector<8x32xf32>
    %34 = arith.mulf %0, %33 : vector<8x32xf32>
    %cst_20 = arith.constant 1.000000e+00 : f32
    %35 = vector.broadcast %cst_20 : f32 to vector<8x32xf32>
    %36 = arith.addf %35, %28 : vector<8x32xf32>
    %37 = arith.mulf %1, %36 : vector<8x32xf32>
    %cst_21 = arith.constant 1.000000e+00 : f32
    %38 = vector.broadcast %cst_21 : f32 to vector<8x32xf32>
    %39 = arith.addf %38, %22 : vector<8x32xf32>
    %40 = arith.mulf %1, %39 : vector<8x32xf32>
    %41 = tpu.concatenate %31, %34, %37, %40 in 1 : vector<8x32xf32>, vector<8x32xf32>, vector<8x32xf32>, vector<8x32xf32> -> vector<8x128xf32>
    %c0_22 = arith.constant 0 : index
    %c0_23 = arith.constant 0 : index
    %42 = vector.load %arg8[%c0_22, %c0_23] : memref<8x128xf32, #tpu.memory_space<vmem>>, vector<8x128xf32>
    tpu.vector_store %arg8[%c0_22, %c0_23], %41 {strides = array<i32>} : memref<8x128xf32, #tpu.memory_space<vmem>>, vector<8x128xf32>,
    return
  }
  func.func @transform_0(%arg0: i32) -> (i32, i32) {
    %c0_i32 = arith.constant 0 : i32
    %c0_i32_0 = arith.constant 0 : i32
    return %arg0, %c0_i32 : i32, i32
  }
  func.func @transform_1(%arg0: i32) -> (i32, i32) {
    %c0_i32 = arith.constant 0 : i32
    %c0_i32_0 = arith.constant 0 : i32
    return %arg0, %c0_i32 : i32, i32
  }
  func.func @transform_2(%arg0: i32) -> (i32, i32) {
    %c0_i32 = arith.constant 0 : i32
    %c0_i32_0 = arith.constant 0 : i32
    %c0_i32_1 = arith.constant 0 : i32
    return %c0_i32, %c0_i32_0 : i32, i32
  }
  func.func @transform_3(%arg0: i32) -> (i32, i32) {
    %c0_i32 = arith.constant 0 : i32
    %c0_i32_0 = arith.constant 0 : i32
    %c0_i32_1 = arith.constant 0 : i32
    return %c0_i32, %c0_i32_0 : i32, i32
  }
  func.func @transform_4(%arg0: i32) -> (i32, i32) {
    %c0_i32 = arith.constant 0 : i32
    %c0_i32_0 = arith.constant 0 : i32
    %c0_i32_1 = arith.constant 0 : i32
    return %c0_i32, %c0_i32_0 : i32, i32
  }
  func.func @transform_5(%arg0: i32) -> (i32, i32) {
    %c0_i32 = arith.constant 0 : i32
    %c0_i32_0 = arith.constant 0 : i32
    %c0_i32_1 = arith.constant 0 : i32
    return %c0_i32, %c0_i32_0 : i32, i32
  }
  func.func @transform_6(%arg0: i32) -> (i32, i32) {
    %c0_i32 = arith.constant 0 : i32
    %c0_i32_0 = arith.constant 0 : i32
    %c0_i32_1 = arith.constant 0 : i32
    return %c0_i32, %c0_i32_0 : i32, i32
  }
  func.func @transform_7(%arg0: i32) -> (i32, i32) {
    %c0_i32 = arith.constant 0 : i32
    %c0_i32_0 = arith.constant 0 : i32
    return %arg0, %c0_i32 : i32, i32
  }
}

</mosaic_0001>

<llo_original>
// kernel: tpu_custom_call.1
$region0: #{tpu_custom_call.1}
  #allocation0 [shape = 'u32[]', space=smem, size = 0x4, offset = 0x4, fixed_abs, tag = 'smem constant byte address 0x4 - core index']
  #allocation1 [shape = 'u32[72,128]{1,0:T(1,128)}', space=vmem, size = 0x9000, scoped, tag = 'internal scratch']
  %s0 = inlined_call_operand.hbm [shape: f32[8,32], index: 0, kind: input, shape index: {}]
  %s1 = inlined_call_operand.hbm [shape: f32[8,32], index: 1, kind: input, shape index: {}]
  %s2 = inlined_call_operand.hbm [shape: f32[32,32], index: 2, kind: input, shape index: {}]
  %s3 = inlined_call_operand.hbm [shape: f32[32,32], index: 3, kind: input, shape index: {}]
  %s4 = inlined_call_operand.vmem [shape: f32[1,32], index: 4, kind: input, shape index: {}]
  %s5 = inlined_call_operand.hbm [shape: f32[32,32], index: 5, kind: input, shape index: {}]
  %s6 = inlined_call_operand.vmem [shape: f32[1,32], index: 6, kind: input, shape index: {}]
  %s7 = inlined_call_operand.hbm [shape: f32[8,128], index: 7, kind: output, shape index: {}]
  %s8 = sld [smem:[#allocation0]]
  $region58: #{tpu_custom_call.1} parent=0
    _
  %s10 = ssub.s32 1, %s8
  %s11 = scalar_select 0, %s10, %s8
  $region1: #{tpu_custom_call.1} parent=0
    #allocation2 [shape = 'u8[4096]{0}', space=vmem, size = 0x1000, scoped, tag = 'input window, operand 0, single buffered']
    #allocation3 [shape = 's32[1]{0}', space=sflag, size = 0x4, scoped, tag = 'scoped memory for tpu_custom_call.1']
    #allocation4 [shape = 's32[1]{0}', space=sflag, size = 0x4, scoped, tag = 'scoped memory for tpu_custom_call.1']
    #allocation5 [shape = 'u8[4096]{0}', space=vmem, size = 0x1000, scoped, tag = 'input window, operand 1, single buffered']
    #allocation6 [shape = 's32[1]{0}', space=sflag, size = 0x4, scoped, tag = 'scoped memory for tpu_custom_call.1']
    #allocation7 [shape = 'u8[16384]{0}', space=vmem, size = 0x4000, scoped, tag = 'input window, operand 2, single buffered']
    #allocation8 [shape = 'u8[16384]{0}', space=vmem, size = 0x4000, scoped, tag = 'input window, operand 3, single buffered']
    #allocation9 [shape = 's32[1]{0}', space=sflag, size = 0x4, scoped, tag = 'scoped memory for tpu_custom_call.1']
    #allocation10 [shape = 'u8[16384]{0}', space=vmem, size = 0x4000, scoped, tag = 'input window, operand 5, single buffered']
    #allocation11 [shape = 'u8[4096]{0}', space=vmem, size = 0x1000, scoped, tag = 'output window, operand 0, single buffered']
    %12 = vsyncpa [#allocation3], 0
    %13 = vsyncpa [#allocation6], 0
    %14 = vsyncpa [#allocation9], 0
    %15 = vsyncpa [#allocation4], 0
    // Predicated region
    $region2: #{tpu_custom_call.1} parent=1 // pred_check
      _
    $region3: #{tpu_custom_call.1} parent=1 // pred_check_branch
      %17 = sbr.rel (0) target = $region5
    $region4: #{tpu_custom_call.1} parent=1 // pred_region
      %19 = vsyncadd [#allocation3], 0
      %s21 = sshll.u32 %s0, 4
      %s22 = int_to_ptr.hbm [resolvable:$true] %s21
      %s23 = sshll.u32 [#allocation2], 4
      %s24 = int_to_ptr.vmem [resolvable:$true] %s23
      %26 = dma.hbm_to_vmem [thread:$0]  %s22, 128, %s24, [#allocation3]
    $region5: #{tpu_custom_call.1} parent=1 // pred_fallthru
      _
    // Predicated region
    $region6: #{tpu_custom_call.1} parent=1 // pred_check
      _
    $region7: #{tpu_custom_call.1} parent=1 // pred_check_branch
      %28 = sbr.rel (0) target = $region9
    $region8: #{tpu_custom_call.1} parent=1 // pred_region
      %30 = vsyncadd [#allocation6], 0
      %s32 = sshll.u32 %s1, 4
      %s33 = int_to_ptr.hbm [resolvable:$true] %s32
      %s34 = sshll.u32 [#allocation5], 4
      %s35 = int_to_ptr.vmem [resolvable:$true] %s34
      %37 = dma.hbm_to_vmem [thread:$0]  %s33, 128, %s35, [#allocation6]
    $region9: #{tpu_custom_call.1} parent=1 // pred_fallthru
      _
    // Predicated region
    $region10: #{tpu_custom_call.1} parent=1 // pred_check
      _
    $region11: #{tpu_custom_call.1} parent=1 // pred_check_branch
      %39 = sbr.rel (0) target = $region13
    $region12: #{tpu_custom_call.1} parent=1 // pred_region
      %41 = vsyncadd [#allocation6], 0
      %s42 = sshll.u32 %s2, 4
      %s43 = int_to_ptr.hbm [resolvable:$true] %s42
      %s44 = sshll.u32 [#allocation7], 4
      %s45 = int_to_ptr.vmem [resolvable:$true] %s44
      %50 = dma.hbm_to_vmem [thread:$0]  %s43, 512, %s45, [#allocation6], 128, 128, 8
    $region13: #{tpu_custom_call.1} parent=1 // pred_fallthru
      _
    // Predicated region
    $region14: #{tpu_custom_call.1} parent=1 // pred_check
      _
    $region15: #{tpu_custom_call.1} parent=1 // pred_check_branch
      %52 = sbr.rel (0) target = $region17
    $region16: #{tpu_custom_call.1} parent=1 // pred_region
      %54 = vsyncadd [#allocation9], 0
      %s55 = sshll.u32 %s3, 4
      %s56 = int_to_ptr.hbm [resolvable:$true] %s55
      %s57 = sshll.u32 [#allocation8], 4
      %s58 = int_to_ptr.vmem [resolvable:$true] %s57
      %63 = dma.hbm_to_vmem [thread:$0]  %s56, 512, %s58, [#allocation9], 128, 128, 8
    $region17: #{tpu_custom_call.1} parent=1 // pred_fallthru
      _
    // Predicated region
    $region18: #{tpu_custom_call.1} parent=1 // pred_check
      _
    $region19: #{tpu_custom_call.1} parent=1 // pred_check_branch
      %65 = sbr.rel (0) target = $region21
    $region20: #{tpu_custom_call.1} parent=1 // pred_region
      _
    $region21: #{tpu_custom_call.1} parent=1 // pred_fallthru
      _
    // Predicated region
    $region22: #{tpu_custom_call.1} parent=1 // pred_check
      _
    $region23: #{tpu_custom_call.1} parent=1 // pred_check_branch
      %67 = sbr.rel (0) target = $region25
    $region24: #{tpu_custom_call.1} parent=1 // pred_region
      %69 = vsyncadd [#allocation9], 0
      %s70 = sshll.u32 %s5, 4
      %s71 = int_to_ptr.hbm [resolvable:$true] %s70
      %s72 = sshll.u32 [#allocation10], 4
      %s73 = int_to_ptr.vmem [resolvable:$true] %s72
      %78 = dma.hbm_to_vmem [thread:$0]  %s71, 512, %s73, [#allocation9], 128, 128, 8
    $region25: #{tpu_custom_call.1} parent=1 // pred_fallthru
      _
    // Predicated region
    $region26: #{tpu_custom_call.1} parent=1 // pred_check
      _
    $region27: #{tpu_custom_call.1} parent=1 // pred_check_branch
      %80 = sbr.rel (0) target = $region29
    $region28: #{tpu_custom_call.1} parent=1 // pred_region
      _
    $region29: #{tpu_custom_call.1} parent=1 // pred_fallthru
      _
    // Predicated region
    $region30: #{tpu_custom_call.1} parent=1 // pred_check
      _
    $region31: #{tpu_custom_call.1} parent=1 // pred_check_branch
      %82 = sbr.rel (0) target = $region33
    $region32: #{tpu_custom_call.1} parent=1 // pred_region
      %84 = dma.done [#allocation3], 128
    $region33: #{tpu_custom_call.1} parent=1 // pred_fallthru
      _
    // Predicated region
    $region34: #{tpu_custom_call.1} parent=1 // pred_check
      _
    $region35: #{tpu_custom_call.1} parent=1 // pred_check_branch
      %86 = sbr.rel (0) target = $region37
    $region36: #{tpu_custom_call.1} parent=1 // pred_region
      %88 = dma.done [#allocation6], 128
    $region37: #{tpu_custom_call.1} parent=1 // pred_fallthru
      _
    // Predicated region
    $region38: #{tpu_custom_call.1} parent=1 // pred_check
      _
    $region39: #{tpu_custom_call.1} parent=1 // pred_check_branch
      %90 = sbr.rel (0) target = $region41
    $region40: #{tpu_custom_call.1} parent=1 // pred_region
      %92 = dma.done [#allocation6], 512
    $region41: #{tpu_custom_call.1} parent=1 // pred_fallthru
      _
    // Predicated region
    $region42: #{tpu_custom_call.1} parent=1 // pred_check
      _
    $region43: #{tpu_custom_call.1} parent=1 // pred_check_branch
      %94 = sbr.rel (0) target = $region45
    $region44: #{tpu_custom_call.1} parent=1 // pred_region
      %96 = dma.done [#allocation9], 512
    $region45: #{tpu_custom_call.1} parent=1 // pred_fallthru
      _
    // Predicated region
    $region46: #{tpu_custom_call.1} parent=1 // pred_check
      _
    $region47: #{tpu_custom_call.1} parent=1 // pred_check_branch
      %98 = sbr.rel (0) target = $region49
    $region48: #{tpu_custom_call.1} parent=1 // pred_region
      %100 = dma.done [#allocation9], 512
    $region49: #{tpu_custom_call.1} parent=1 // pred_fallthru
      _
    %v101 = vld [vmem:[#allocation2] sm:$0xff]
    %v102 = vld [vmem:[#allocation5] sm:$0xff]
    %v103 = vld [vmem:[#allocation7] sm:$0xff]
    %v104 = vld [vmem:[#allocation7 + $0x8] sm:$0xff]
    %v105 = vld [vmem:[#allocation7 + $0x10] sm:$0xff]
    %v106 = vld [vmem:[#allocation7 + $0x18] sm:$0xff]
    %v107 = vld [vmem:[#allocation8] sm:$0xff]
    %v108 = vld [vmem:[#allocation8 + $0x8] sm:$0xff]
    %v109 = vld [vmem:[#allocation8 + $0x10] sm:$0xff]
    %v110 = vld [vmem:[#allocation8 + $0x18] sm:$0xff]
    %vm111 = vcmask 261120
    %v113 = vsel %vm111, %v102, 0
    %115 = vmatpush.msra.mxu0 0.0
    %116 = vmatpush.msra.mxu0 0.0
    %117 = vmatpush.msra.mxu0 0.0
    %118 = vmatpush.msra.mxu0 0.0
    %119 = vmatpush.msra.mxu0 0.0
    %120 = vmatpush.msra.mxu0 0.0
    %121 = vmatpush.msra.mxu0 0.0
    %122 = vmatpush.msra.mxu0 0.0
    %123 = vmatpush.msra.mxu0 0.0
    %124 = vmatpush.msra.mxu0 0.0
    %125 = vmatpush.msra.mxu0 0.0
    %126 = vmatpush.msra.mxu0 0.0
    %127 = vmatpush.msra.mxu0 %v110
    %128 = vmatpush.msra.mxu0 %v109
    %129 = vmatpush.msra.mxu0 %v108
    %130 = vmatpush.msra.mxu0 %v107
    %131 = vmatmul.f32.gmra.mxu0 %v113
    %v132 = vpop.f32.mrf.mxu0
    %v133 = vadd.f32 0.0, %v132
    %134 = vdwg.mxu0
    %v136 = vsel %vm111, %v101, 0
    %138 = vmatpush.msra.mxu0 0.0
    %139 = vmatpush.msra.mxu0 0.0
    %140 = vmatpush.msra.mxu0 0.0
    %141 = vmatpush.msra.mxu0 0.0
    %142 = vmatpush.msra.mxu0 0.0
    %143 = vmatpush.msra.mxu0 0.0
    %144 = vmatpush.msra.mxu0 0.0
    %145 = vmatpush.msra.mxu0 0.0
    %146 = vmatpush.msra.mxu0 0.0
    %147 = vmatpush.msra.mxu0 0.0
    %148 = vmatpush.msra.mxu0 0.0
    %149 = vmatpush.msra.mxu0 0.0
    %150 = vmatpush.msra.mxu0 %v106
    %151 = vmatpush.msra.mxu0 %v105
    %152 = vmatpush.msra.mxu0 %v104
    %153 = vmatpush.msra.mxu0 %v103
    %154 = vmatmul.f32.gmra.mxu0 %v136
    %v155 = vpop.f32.mrf.mxu0
    %v156 = vadd.f32 %v133, %v155
    %157 = vdwg.mxu0
    %v158 = vld [vmem:[%s4] sm:$0x1]
    %v160 = vperm.slane %v158, 0
    %v162 = vadd.f32 %v156, %v160
    %v163 = vmax.f32 %v162, 0.0
    %v164 = vld [vmem:[#allocation10] sm:$0xff]
    %v165 = vld [vmem:[#allocation10 + $0x8] sm:$0xff]
    %v166 = vld [vmem:[#allocation10 + $0x10] sm:$0xff]
    %v167 = vld [vmem:[#allocation10 + $0x18] sm:$0xff]
    %v168 = vld [vmem:[%s6] sm:$0x1]
    %v170 = vperm.slane %v168, 0
    %v173 = vsel %vm111, %v163, 0
    %175 = vmatpush.msra.mxu0 0.0
    %176 = vmatpush.msra.mxu0 0.0
    %177 = vmatpush.msra.mxu0 0.0
    %178 = vmatpush.msra.mxu0 0.0
    %179 = vmatpush.msra.mxu0 0.0
    %180 = vmatpush.msra.mxu0 0.0
    %181 = vmatpush.msra.mxu0 0.0
    %182 = vmatpush.msra.mxu0 0.0
    %183 = vmatpush.msra.mxu0 0.0
    %184 = vmatpush.msra.mxu0 0.0
    %185 = vmatpush.msra.mxu0 0.0
    %186 = vmatpush.msra.mxu0 0.0
    %187 = vmatpush.msra.mxu0 %v167
    %188 = vmatpush.msra.mxu0 %v166
    %189 = vmatpush.msra.mxu0 %v165
    %190 = vmatpush.msra.mxu0 %v164
    %191 = vmatmul.f32.gmra.mxu0 %v173
    %v192 = vpop.f32.mrf.mxu0
    %v193 = vadd.f32 %v170, %v192
    %194 = vdwg.mxu0
    %v195 = vmul.f32 %v193, %v101
    %v196 = vxor.u32 %v195, 2147483648
    %v197 = vmul.f32 %v196, 1.442695
    %v198 = vpow.pop %v197
    %v199 = vadd.f32 %v198, 1.0
    %v200 = vrcp.pop %v199
    %v201 = vmul.f32 %v199, %v200
    %v202 = vsub.f32 1.0, %v201
    %v203 = vmul.f32 %v200, %v202
    %v204 = vadd.f32 %v200, %v203
    %vm205 = vweird.f32 %v199
    %vm206 = vweird.f32 %v200
    %vm207 = vmor %vm205, %vm206
    %v208 = vsel %vm207, %v200, %v204
    %v209 = vand.u32 2147483647, %v199
    %vm210 = vcmp.eq.f32.partialorder %v209, 8.507059e+37
    %v211 = vand.u32 %v199, 2147483648
    %v212 = vor.u32 1.1754944e-38, %v211
    %v213 = vsel %vm210, %v212, %v208
    %v214 = vmul.f32 1.0, %v213
    %v215 = vmul.f32 %v193, %v102
    %v216 = vxor.u32 %v215, 2147483648
    %v217 = vmul.f32 %v216, 1.442695
    %v218 = vpow.pop %v217
    %v219 = vadd.f32 %v218, 1.0
    %v220 = vrcp.pop %v219
    %v221 = vmul.f32 %v219, %v220
    %v222 = vsub.f32 1.0, %v221
    %v223 = vmul.f32 %v220, %v222
    %v224 = vadd.f32 %v220, %v223
    %vm225 = vweird.f32 %v219
    %vm226 = vweird.f32 %v220
    %vm227 = vmor %vm225, %vm226
    %v228 = vsel %vm227, %v220, %v224
    %v229 = vand.u32 2147483647, %v219
    %vm230 = vcmp.eq.f32.partialorder %v229, 8.507059e+37
    %v231 = vand.u32 %v219, 2147483648
    %v232 = vor.u32 1.1754944e-38, %v231
    %v233 = vsel %vm230, %v232, %v228
    %v234 = vmul.f32 1.0, %v233
    %v235 = vadd.f32 %v214, 1.0
    %v236 = vmul.f32 %v101, %v235
    %v237 = vadd.f32 %v234, 1.0
    %v238 = vmul.f32 %v101, %v237
    %v239 = vmul.f32 %v102, %v237
    %v240 = vmul.f32 %v102, %v235
    %242 = vrot.lane.b32.xlu0 %v238, 32
    %v243 = vpop.permute.xlu0 %242
    %246 = vrot.lane.b32.xlu0 %v239, 64
    %v247 = vpop.permute.xlu0 %246
    %250 = vrot.lane.b32.xlu0 %v240, 96
    %v251 = vpop.permute.xlu0 %250
    %v253 = vsel %vm111, %v236, %v243
    %vm254 = vcmask 523264
    %v255 = vsel %vm254, %v253, %v247
    %vm256 = vcmask 785408
    %v257 = vsel %vm256, %v255, %v251
    %258 = vst [vmem:[#allocation11] sm:$0xff] %v257
    // Predicated region
    $region50: #{tpu_custom_call.1} parent=1 // pred_check
      _
    $region51: #{tpu_custom_call.1} parent=1 // pred_check_branch
      %260 = sbr.rel (0) target = $region53
    $region52: #{tpu_custom_call.1} parent=1 // pred_region
      %262 = vsyncadd [#allocation4], 0
      %s264 = sshll.u32 [#allocation11], 4
      %s265 = int_to_ptr.vmem [resolvable:$true] %s264
      %s266 = sshll.u32 %s7, 4
      %s267 = int_to_ptr.hbm [resolvable:$true] %s266
      %269 = dma.vmem_to_hbm [thread:$0]  %s265, 128, %s267, [#allocation4]
    $region53: #{tpu_custom_call.1} parent=1 // pred_fallthru
      _
    // Predicated region
    $region54: #{tpu_custom_call.1} parent=1 // pred_check
      _
    $region55: #{tpu_custom_call.1} parent=1 // pred_check_branch
      %271 = sbr.rel (0) target = $region57
    $region56: #{tpu_custom_call.1} parent=1 // pred_region
      %273 = dma.done [#allocation4], 128
    $region57: #{tpu_custom_call.1} parent=1 // pred_fallthru
      _
    %274 = vsyncpa [#allocation3], 1
    %275 = vsyncpa [#allocation6], 1
    %276 = vsyncpa [#allocation9], 1
    %277 = vsyncpa [#allocation4], 1

</llo_original>
